<compile_context>
chip_gen: v7x
topology: tpu7x:2x2x1
jax: 0.10.0
libtpu: 0.0.40
codegen_flags: <defaults>
</compile_context>

<pallas_src>
import functools

import jax
import jax.numpy as jnp
from jax import lax
from jax.experimental import pallas as pl
from jax.experimental.pallas import tpu as pltpu


# (name, kh, kw, dilation) for the ten non-1x1 convs, in kernel order.
CONV_SPECS = (
    ("b1_1", 1, 3, 1), ("b1_2", 3, 1, 1), ("b1_3", 3, 3, 3),
    ("b2_1", 1, 5, 1), ("b2_2", 5, 1, 1), ("b2_3", 3, 3, 5),
    ("b3_1", 1, 7, 1), ("b3_2", 7, 1, 1), ("b3_3", 3, 3, 7),
    ("cat",  3, 3, 1),
)


def _probe_roll_is_jnp_roll():
    """Tiny one-off kernel pinning pltpu.roll's rotation convention."""
    def k(x_ref, o_ref):
        o_ref[...] = pltpu.roll(x_ref[...], 1, 1)

    x = jnp.arange(8 * 128, dtype=jnp.float32).reshape(8, 128)
    y = pl.pallas_call(
        k, out_shape=jax.ShapeDtypeStruct((8, 128), jnp.float32))(x)
    # jnp.roll convention: result[0, 0] == x[0, 127] == 127.
    return bool(jax.device_get(y[0, 0]) == 127.0)


# ----------------------------------------------------------------------------
# Fused RF kernel.
# ----------------------------------------------------------------------------
def _make_rf_kernel(H, W, cin, co, roll_like_jnp):
    hw = H * W

    def kernel(*refs):
        x_ref, hidx_ref, widx_ref, head_w_ref, head_b_ref = refs[:5]
        conv_refs = refs[5:5 + 2 * len(CONV_SPECS)]
        o_ref = refs[-1]

        x = x_ref[0]              # (cin, hw)  f32
        h_idx = hidx_ref[...]     # (1, hw)    int32
        w_idx = widx_ref[...]     # (1, hw)    int32

        mask_cache = {}

        def tap_mask(dy, dx):
            # float 0/1 mask: destination pixels whose (h+dy, w+dx) source is
            # inside the image (implements 'same' zero padding).
            if (dy, dx) not in mask_cache:
                valid = ((h_idx + dy >= 0) & (h_idx + dy < H) &
                         (w_idx + dx >= 0) & (w_idx + dx < W))
                mask_cache[(dy, dx)] = valid.astype(jnp.float32)
            return mask_cache[(dy, dx)]

        def shifted_tap(a, dy, dx):
            # result[:, h*W + w] = a[:, (h+dy)*W + (w+dx)] or 0 out of bounds.
            delta = dy * W + dx
            if delta == 0:
                return a
            amt = (-delta) % hw if roll_like_jnp else delta % hw
            sh = pltpu.roll(a, amt, 1)            # circular lane shift (XLU)
            return sh * tap_mask(dy, dx)

        def conv(a, w_ref, b_ref, kh, kw, dil):
            # One matmul per conv: stack the KH*KW shifted taps along the
            # (sublane) contraction axis and hit the MXU once.
            ph, pw = (kh - 1) // 2, (kw - 1) // 2
            taps = [shifted_tap(a, (i - ph) * dil, (j - pw) * dil)
                    for i in range(kh) for j in range(kw)]
            patch = taps[0] if len(taps) == 1 else jnp.concatenate(taps, axis=0)
            return jnp.dot(w_ref[...], patch,
                           preferred_element_type=jnp.float32) + b_ref[...]

        # Merged 1x1 convs: branch0, branch1/2/3 heads and conv_res.
        head = jnp.dot(head_w_ref[...], x,
                       preferred_element_type=jnp.float32) + head_b_ref[...]
        x0 = head[0 * co:1 * co]
        branch_in = [head[1 * co:2 * co],
                     head[2 * co:3 * co],
                     head[3 * co:4 * co]]
        res = head[4 * co:5 * co]

        branch_out = []
        for b in range(3):
            a = branch_in[b]
            for c in range(3):
                idx = 3 * b + c
                _, kh, kw, dil = CONV_SPECS[idx]
                a = conv(a, conv_refs[2 * idx], conv_refs[2 * idx + 1],
                         kh, kw, dil)
            branch_out.append(a)

        cat_in = jnp.concatenate([x0] + branch_out, axis=0)     # (4*co, hw)
        _, kh, kw, dil = CONV_SPECS[9]
        x_cat = conv(cat_in, conv_refs[18], conv_refs[19], kh, kw, dil)

        # relu(conv_cat(cat) + conv_res(x))
        o_ref[0] = jnp.maximum(x_cat + res, 0.0).astype(o_ref.dtype)

    return kernel


def rf_forward_pallas(x_nchw, kp, *, roll_like_jnp=True):
    """Fused RF forward. x_nchw: (N, Cin, H, W) f32 -> (N, Cout, H, W) f32."""
    N, cin, H, W = x_nchw.shape
    hw = H * W
    co = kp["head_w"].shape[0] // 5

    xf = x_nchw.reshape(N, cin, hw).astype(jnp.float32)
    f = jnp.arange(hw, dtype=jnp.int32)
    h_idx = (f // W).reshape(1, hw)
    w_idx = (f % W).reshape(1, hw)

    args = [xf, h_idx, w_idx, kp["head_w"], kp["head_b"]]
    for name, _, _, _ in CONV_SPECS:
        args += [kp[name + "_w"], kp[name + "_b"]]

    in_specs = [pl.BlockSpec((1, cin, hw), lambda n: (n, 0, 0))]
    in_specs += [pl.BlockSpec(a.shape, lambda n: (0, 0)) for a in args[1:]]
    out_specs = pl.BlockSpec((1, co, hw), lambda n: (n, 0, 0))

    kernel = _make_rf_kernel(H, W, cin, co, roll_like_jnp)
    out = pl.pallas_call(
        kernel,
        out_shape=jax.ShapeDtypeStruct((N, co, hw), jnp.float32),
        grid=(N,),
        in_specs=in_specs,
        out_specs=out_specs,
        compiler_params=pltpu.CompilerParams(
            dimension_semantics=("parallel",),
            vmem_limit_bytes=32 * 1024 * 1024),
    )(*args)
    return out.reshape(N, co, H, W)


# ----------------------------------------------------------------------------
# Deterministic parameter init (BasicConv2d = conv(bias=False) + eval-mode BN)
# and packing into the fused-kernel layout (BN scale folded into the weight).
# ----------------------------------------------------------------------------
def init_basic_conv(key, cin, cout, kh, kw):
    kw_, kg, kb, km, kv = jax.random.split(key, 5)
    w = jax.random.normal(kw_, (kh, kw, cin, cout), jnp.float32) * 0.1
    gamma = jax.random.uniform(kg, (cout,), jnp.float32, 0.5, 1.5)
    beta = jax.random.normal(kb, (cout,), jnp.float32) * 0.1
    mean = jax.random.normal(km, (cout,), jnp.float32) * 0.1
    var = jax.random.uniform(kv, (cout,), jnp.float32, 0.5, 1.5)
    eps = 1e-5
    scale = gamma / jnp.sqrt(var + eps)
    bias = beta - mean * scale
    return {"w": w, "scale": scale, "bias": bias}


def init_rf_params(key, in_channel, out_channel):
    keys = jax.random.split(key, 16)
    p = {}
    p["b0_0"] = init_basic_conv(keys[0], in_channel, out_channel, 1, 1)
    p["b1_0"] = init_basic_conv(keys[1], in_channel, out_channel, 1, 1)
    p["b1_1"] = init_basic_conv(keys[2], out_channel, out_channel, 1, 3)
    p["b1_2"] = init_basic_conv(keys[3], out_channel, out_channel, 3, 1)
    p["b1_3"] = init_basic_conv(keys[4], out_channel, out_channel, 3, 3)
    p["b2_0"] = init_basic_conv(keys[5], in_channel, out_channel, 1, 1)
    p["b2_1"] = init_basic_conv(keys[6], out_channel, out_channel, 1, 5)
    p["b2_2"] = init_basic_conv(keys[7], out_channel, out_channel, 5, 1)
    p["b2_3"] = init_basic_conv(keys[8], out_channel, out_channel, 3, 3)
    p["b3_0"] = init_basic_conv(keys[9], in_channel, out_channel, 1, 1)
    p["b3_1"] = init_basic_conv(keys[10], out_channel, out_channel, 1, 7)
    p["b3_2"] = init_basic_conv(keys[11], out_channel, out_channel, 7, 1)
    p["b3_3"] = init_basic_conv(keys[12], out_channel, out_channel, 3, 3)
    p["cat"] = init_basic_conv(keys[13], 4 * out_channel, out_channel, 3, 3)
    p["res"] = init_basic_conv(keys[14], in_channel, out_channel, 1, 1)
    return p


def pack_rf_params(p):
    def fold(pc):
        kh, kw, ci, cout = pc["w"].shape
        w = pc["w"] * pc["scale"].reshape(1, 1, 1, cout)   # fold BN scale
        # (Cout, KH*KW*Cin), column order = (kh, kw, cin) -- matches the
        # tap-stacking order used in the kernel.
        wm = jnp.transpose(w, (3, 0, 1, 2)).reshape(cout, kh * kw * ci)
        return wm, pc["bias"].reshape(cout, 1)

    kp = {}
    head_w, head_b = zip(*[fold(p[n]) for n in
                           ("b0_0", "b1_0", "b2_0", "b3_0", "res")])
    kp["head_w"] = jnp.concatenate(head_w, axis=0)   # (5*Cout, Cin)
    kp["head_b"] = jnp.concatenate(head_b, axis=0)   # (5*Cout, 1)
    for name, _, _, _ in CONV_SPECS:
        wm, b = fold(p[name])
        kp[name + "_w"] = wm
        kp[name + "_b"] = b
    return kp


# ----------------------------------------------------------------------------
# Pure-JAX reference (lax.conv_general_dilated) for verification only.
# ----------------------------------------------------------------------------
def _conv_bn_ref(x, pc, dil=1):
    kh, kw, _, cout = pc["w"].shape
    ph = (kh - 1) * dil // 2
    pw = (kw - 1) * dil // 2
    y = lax.conv_general_dilated(
        x, pc["w"], window_strides=(1, 1),
        padding=[(ph, ph), (pw, pw)], rhs_dilation=(dil, dil),
        dimension_numbers=("NHWC", "HWIO", "NHWC"))
    return (y * pc["scale"].reshape(1, 1, 1, cout)
            + pc["bias"].reshape(1, 1, 1, cout))


def rf_forward_ref(x_nchw, p):
    x = jnp.transpose(x_nchw, (0, 2, 3, 1))
    x0 = _conv_bn_ref(x, p["b0_0"])
    b1 = _conv_bn_ref(_conv_bn_ref(_conv_bn_ref(x, p["b1_0"]), p["b1_1"]),
                      p["b1_2"])
    x1 = _conv_bn_ref(b1, p["b1_3"], dil=3)
    b2 = _conv_bn_ref(_conv_bn_ref(_conv_bn_ref(x, p["b2_0"]), p["b2_1"]),
                      p["b2_2"])
    x2 = _conv_bn_ref(b2, p["b2_3"], dil=5)
    b3 = _conv_bn_ref(_conv_bn_ref(_conv_bn_ref(x, p["b3_0"]), p["b3_1"]),
                      p["b3_2"])
    x3 = _conv_bn_ref(b3, p["b3_3"], dil=7)
    x_cat = _conv_bn_ref(jnp.concatenate([x0, x1, x2, x3], axis=-1), p["cat"])
    out = jnp.maximum(x_cat + _conv_bn_ref(x, p["res"]), 0.0)
    return jnp.transpose(out, (0, 3, 1, 2))


if __name__ == "__main__":
    # Small shapes: batch=2, in_channel=4, out_channel=8, spatial=16x16.
    N, Cin, Cout, H, W = 2, 4, 8, 16, 16

    key = jax.random.PRNGKey(0)
    kx, kparam = jax.random.split(key)
    x = jax.random.normal(kx, (N, Cin, H, W), jnp.float32)
    raw_params = init_rf_params(kparam, Cin, Cout)
    packed_params = pack_rf_params(raw_params)

    roll_like_jnp = _probe_roll_is_jnp_roll()

    fwd = jax.jit(functools.partial(rf_forward_pallas,
                                    roll_like_jnp=roll_like_jnp))
    out = jax.block_until_ready(fwd(x, packed_params))

    # Correctness check against the pure-JAX reference.
    ref = jax.block_until_ready(rf_forward_ref(x, raw_params))
    assert out.shape == (N, Cout, H, W), out.shape
    assert jnp.allclose(out, ref, rtol=1e-3, atol=1e-3), \
        float(jnp.max(jnp.abs(out - ref)))

    print("KERNEL_OK")
</pallas_src>

<mosaic_0001>
module attributes {stable_mosaic.version = 11 : i64} {
  func.func @k(%arg0: memref<8x128xf32, #tpu.memory_space<vmem>>, %arg1: memref<8x128xf32, #tpu.memory_space<vmem>>) attributes {dimension_semantics = [], scalar_prefetch = 0 : i64, scratch_operands = 0 : i64, tpu.core_type = #tpu.core_type<tc>} {
    %c0 = arith.constant 0 : index
    %c0_0 = arith.constant 0 : index
    %0 = vector.load %arg0[%c0, %c0_0] : memref<8x128xf32, #tpu.memory_space<vmem>>, vector<8x128xf32>
    %c1_i32 = arith.constant 1 : i32
    %1 = tpu.dynamic_rotate %0 by %c1_i32 dim 1 : vector<8x128xf32>, i32 -> vector<8x128xf32>
    %c0_1 = arith.constant 0 : index
    %c0_2 = arith.constant 0 : index
    %2 = vector.load %arg1[%c0_1, %c0_2] : memref<8x128xf32, #tpu.memory_space<vmem>>, vector<8x128xf32>
    tpu.vector_store %arg1[%c0_1, %c0_2], %1 {strides = array<i32>} : memref<8x128xf32, #tpu.memory_space<vmem>>, vector<8x128xf32>,
    return
  }
}

</mosaic_0001>

<llo_original>
// kernel: tpu_custom_call.1
$region0: #{tpu_custom_call.1}
  #allocation0 [shape = 'u32[]', space=smem, size = 0x4, offset = 0x4, fixed_abs, tag = 'smem constant byte address 0x4 - core index']
  #allocation1 [shape = 'u32[144,128]{1,0:T(1,128)}', space=vmem, size = 0x12000, scoped, tag = 'internal scratch']
  %s0 = inlined_call_operand.hbm [shape: f32[8,128], index: 0, kind: input, shape index: {}]
  %s1 = inlined_call_operand.hbm [shape: f32[8,128], index: 1, kind: output, shape index: {}]
  %s2 = sld [smem:[#allocation0]]
  $region18: #{tpu_custom_call.1} parent=0
    _
  %s4 = ssub.s32 1, %s2
  %s5 = scalar_select 0, %s4, %s2
  $region1: #{tpu_custom_call.1} parent=0
    #allocation2 [shape = 'u8[4096]{0}', space=vmem, size = 0x1000, scoped, tag = 'input window, operand 0, single buffered']
    #allocation3 [shape = 's32[1]{0}', space=sflag, size = 0x4, scoped, tag = 'scoped memory for tpu_custom_call.1']
    #allocation4 [shape = 's32[1]{0}', space=sflag, size = 0x4, scoped, tag = 'scoped memory for tpu_custom_call.1']
    #allocation5 [shape = 'u8[4096]{0}', space=vmem, size = 0x1000, scoped, tag = 'output window, operand 0, single buffered']
    %6 = vsyncpa [#allocation3], 0
    %7 = vsyncpa [#allocation4], 0
    // Predicated region
    $region2: #{tpu_custom_call.1} parent=1 // pred_check
      _
    $region3: #{tpu_custom_call.1} parent=1 // pred_check_branch
      %9 = sbr.rel (0) target = $region5
    $region4: #{tpu_custom_call.1} parent=1 // pred_region
      %s11 = ssub.s32 128, 128
      %12 = vsyncadd [#allocation3], %s11
      %s14 = sshll.u32 [#allocation2], 4
      %s15 = int_to_ptr.vmem [resolvable:$true] %s14
      %17 = dma.hbm_to_vmem [thread:$0]  %s0, 128, %s15, [#allocation3]
    $region5: #{tpu_custom_call.1} parent=1 // pred_fallthru
      _
    // Predicated region
    $region6: #{tpu_custom_call.1} parent=1 // pred_check
      _
    $region7: #{tpu_custom_call.1} parent=1 // pred_check_branch
      %19 = sbr.rel (0) target = $region9
    $region8: #{tpu_custom_call.1} parent=1 // pred_region
      %20 = dma.done [#allocation3], 128
    $region9: #{tpu_custom_call.1} parent=1 // pred_fallthru
      _
    %v21 = vld [vmem:[#allocation2] sm:$0xff]
    %22 = vrot.lane.b32.xlu0 %v21, 1
    %v23 = vpop.permute.xlu0 %22
    %24 = vst [vmem:[#allocation5] sm:$0xff] %v23
    // Predicated region
    $region10: #{tpu_custom_call.1} parent=1 // pred_check
      _
    $region11: #{tpu_custom_call.1} parent=1 // pred_check_branch
      %26 = sbr.rel (0) target = $region13
    $region12: #{tpu_custom_call.1} parent=1 // pred_region
      %s28 = ssub.s32 128, 128
      %29 = vsyncadd [#allocation4], %s28
      %s31 = sshll.u32 [#allocation5], 4
      %s32 = int_to_ptr.vmem [resolvable:$true] %s31
      %34 = dma.vmem_to_hbm [thread:$0]  %s32, 128, %s1, [#allocation4]
    $region13: #{tpu_custom_call.1} parent=1 // pred_fallthru
      _
    // Predicated region
    $region14: #{tpu_custom_call.1} parent=1 // pred_check
      _
    $region15: #{tpu_custom_call.1} parent=1 // pred_check_branch
      %36 = sbr.rel (0) target = $region17
    $region16: #{tpu_custom_call.1} parent=1 // pred_region
      %37 = dma.done [#allocation4], 128
    $region17: #{tpu_custom_call.1} parent=1 // pred_fallthru
      _
    %38 = vsyncpa [#allocation3], 1
    %39 = vsyncpa [#allocation4], 1

</llo_original>
